<compile_context>
chip_gen: v6e
topology: v6e:2x2x1
jax: 0.10.0
libtpu: 0.0.40
codegen_flags: <defaults>
</compile_context>

<pallas_src>
import functools

import jax
import jax.numpy as jnp
from jax.experimental import pallas as pl
from jax.experimental.pallas import tpu as pltpu


# ----------------------------------------------------------------------------
# Pallas kernel
# ----------------------------------------------------------------------------
def _boxes_kernel(x_ref, scales_ref, out_ref, *, convert_cxcywh):
    """Convert + normalize 32 boxes per 128-lane row.

    x_ref      : (tile_r, 128) f32 VMEM — lanes hold repeating [x1, y1, x2, y2].
    scales_ref : (2,)          f32 SMEM — [1/W, 1/H] (or [1, 1]).
    out_ref    : (tile_r, 128) f32 VMEM — repeating [cx, cy, w, h] (or xyxy),
                 multiplied by the per-coordinate scale.
    """
    x = x_ref[...]
    sw = scales_ref[0]                       # scalar f32 from SMEM
    sh = scales_ref[1]

    lane = jax.lax.broadcasted_iota(jnp.int32, x.shape, dimension=1)
    # Per-lane w/h scale: even lanes are x-coords (scale by 1/W), odd are y.
    s_wh = jnp.where(lane % 2 == 0, sw, sh)

    if convert_cxcywh:
        # Partner coordinate lives 2 lanes away within each 4-lane box group:
        #   lanes {0,1} (x1,y1) need lane+2 (x2,y2) -> rotate left  by 2
        #   lanes {2,3} (x2,y2) need lane-2 (x1,y1) -> rotate right by 2
        # INVARIANT (load-bearing): the wrap-around lanes of each roll
        # (126/127 for `fwd`, 0/1 for `bwd`) are never selected by the
        # `lane % 4 < 2` mask below — do not change the mask or the shifts
        # independently.
        fwd = pltpu.roll(x, shift=126, axis=1)   # fwd[:, j] = x[:, (j + 2) % 128]
        bwd = pltpu.roll(x, shift=2, axis=1)     # bwd[:, j] = x[:, (j - 2) % 128]
        is_lo = (lane % 4) < 2
        out = jnp.where(is_lo, (x + fwd) * 0.5, x - bwd) * s_wh
    else:
        out = x * s_wh

    out_ref[...] = out


# ----------------------------------------------------------------------------
# Helpers
# ----------------------------------------------------------------------------
def _boxes_jnp(boxes, sw, sh, convert):
    """Fused-XLA fast path: one HBM read + one write, no kernel launch."""
    if convert:
        x1, y1, x2, y2 = (boxes[:, i] for i in range(4))
        return jnp.stack(
            [(x1 + x2) * (0.5 * sw), (y1 + y2) * (0.5 * sh),
             (x2 - x1) * sw, (y2 - y1) * sh], axis=-1)
    return boxes * jnp.stack([sw, sh, sw, sh])


def _pick_tile_rows(rows):
    """Row-tile size for the [rows, 128] lane-dense view.

    * rows < 16  : single full block (full-dim block is always legal).
    * rows >= 16 : at least 2 grid steps (both v7x TensorCores get work),
      blocks up to 2048 rows (1 MiB) to amortize the ~0.35 us/step overhead;
      double-buffered in+out footprint (~4 MiB) is far below every
      generation's scoped-VMEM default.
    """
    if rows < 16:
        return rows
    half = -(-rows // 2)
    tile = -(-half // 8) * 8          # round up to the 8-sublane multiple
    return min(2048, tile)


# ----------------------------------------------------------------------------
# Wrapper (the "GetBoxesTensor" forward)
# ----------------------------------------------------------------------------
def get_boxes_tensor(boxes_xyxy, img_size_wh, *, fmt="cxcywh",
                     normalize="with_padding", donate_boxes=False,
                     pallas_min_boxes=8192):
    """JAX/Pallas equivalent of GetBoxesTensor.forward.

    boxes_xyxy : [num_boxes, 4] float32 boxes in (x1, y1, x2, y2), image scale.
    img_size_wh: (W, H) padded image size (the Images structure). May be traced.
    donate_boxes: if True and the Pallas path is taken, the output aliases the
                  (flattened) input buffer (caller must not reuse boxes_xyxy).
    pallas_min_boxes: below this box count (or when N % 32 != 0) a fused jnp
                  expression is used instead of a standalone pallas_call.
    Returns    : [num_boxes, 4] float32 boxes tensor (boxes.boxes).
    """
    # clone / detach / storage_dict lookup are identity / host-side under JAX.
    n = int(boxes_xyxy.shape[0])
    boxes = boxes_xyxy.astype(jnp.float32)

    if n == 0:
        return jnp.zeros((0, 4), jnp.float32)

    # Per-coordinate scale, built with jnp so traced image sizes work under jit.
    if normalize == "with_padding":
        sw = 1.0 / jnp.asarray(img_size_wh[0], jnp.float32)
        sh = 1.0 / jnp.asarray(img_size_wh[1], jnp.float32)
    elif normalize in ("false", None):
        # TODO(synk): 'false' maps to Boxes.to_img_scale; inputs here are
        # assumed already image-scale, so this is an identity scale.
        sw = jnp.float32(1.0)
        sh = jnp.float32(1.0)
    elif normalize == "without_padding":
        # TODO(synk): needs per-image (unpadded) sizes + batch-id gather.
        raise ValueError("normalize='without_padding' is not implemented")
    else:
        raise ValueError(
            f"Invalid normalization string in GetBoxesTensor (got {normalize}).")

    if fmt not in (None, "xyxy", "cxcywh"):
        # TODO(synk): other Boxes formats (e.g. 'xywh') are not implemented.
        raise ValueError(f"Unsupported box format: {fmt}")
    convert = fmt == "cxcywh"

    # Small-N / misaligned fast path: kernel launch + per-step overhead would
    # dominate, and a misaligned N would otherwise need pad/slice HBM passes.
    if n < pallas_min_boxes or n % 32 != 0:
        return _boxes_jnp(boxes, sw, sh, convert)

    # Lane-dense view: 32 boxes per 128-lane row (free row-major reshape of the
    # contiguous [N, 4] tensor) -> fully packed f32 vregs, unmasked stores.
    rows = n // 32
    flat = boxes.reshape(rows, 128)
    scales = jnp.stack([sw, sh])                       # (2,) f32 -> SMEM

    tile_r = _pick_tile_rows(rows)
    grid = (pl.cdiv(rows, tile_r),)

    grid_spec = pltpu.PrefetchScalarGridSpec(
        num_scalar_prefetch=0,
        grid=grid,
        in_specs=[
            pl.BlockSpec((tile_r, 128), lambda i: (i, 0)),            # box lanes
            pl.BlockSpec(memory_space=pltpu.MemorySpace.SMEM),        # [1/W, 1/H]
        ],
        out_specs=pl.BlockSpec((tile_r, 128), lambda i: (i, 0)),
    )

    out_flat = pl.pallas_call(
        functools.partial(_boxes_kernel, convert_cxcywh=convert),
        out_shape=jax.ShapeDtypeStruct((rows, 128), jnp.float32),
        grid_spec=grid_spec,
        compiler_params=pltpu.CompilerParams(
            dimension_semantics=("parallel",)),
        input_output_aliases={0: 0} if donate_boxes else {},
    )(flat, scales)

    return out_flat.reshape(n, 4)        # free reshape back to [N, 4]


# ----------------------------------------------------------------------------
# Reference (pure JAX) for sanity checking
# ----------------------------------------------------------------------------
def _reference(boxes_xyxy, img_size_wh):
    x1, y1, x2, y2 = (boxes_xyxy[:, i] for i in range(4))
    cxcywh = jnp.stack(
        [(x1 + x2) * 0.5, (y1 + y2) * 0.5, x2 - x1, y2 - y1], axis=-1)
    w, h = img_size_wh
    return cxcywh / jnp.array([w, h, w, h], jnp.float32)


if __name__ == "__main__":
    key = jax.random.PRNGKey(0)
    keys = jax.random.split(key, 5)

    img_w, img_h = 64.0, 48.0            # padded image size (Images structure)

    def make_boxes(k, num_boxes):
        ka, kb = jax.random.split(k)
        xy1 = jax.random.uniform(ka, (num_boxes, 2), jnp.float32,
                                 minval=0.0, maxval=img_w * 0.5)
        wh = jax.random.uniform(kb, (num_boxes, 2), jnp.float32,
                                minval=1.0, maxval=img_w * 0.4)
        return jnp.concatenate([xy1, xy1 + wh], axis=-1)   # [num_boxes, 4]

    # 1) Small / misaligned N -> fused jnp fast path (no kernel launch).
    for k, nb in ((keys[0], 8), (keys[1], 37)):
        b = make_boxes(k, nb)
        out = jax.block_until_ready(
            get_boxes_tensor(b, (img_w, img_h), fmt="cxcywh",
                             normalize="with_padding"))
        ref = _reference(b, (img_w, img_h))
        assert out.shape == (nb, 4)
        assert jnp.allclose(out, ref, atol=1e-6, rtol=1e-6)

    # 2) Aligned small case forced through the Pallas kernel, plus a jitted
    #    call with traced image sizes (exercises the SMEM scale input).
    b64 = make_boxes(keys[2], 64)
    ref64 = _reference(b64, (img_w, img_h))
    out64 = jax.block_until_ready(
        get_boxes_tensor(b64, (img_w, img_h), pallas_min_boxes=0))
    assert jnp.allclose(out64, ref64, atol=1e-6, rtol=1e-6)

    jit_fn = jax.jit(lambda bb, wh: get_boxes_tensor(
        bb, (wh[0], wh[1]), fmt="cxcywh", normalize="with_padding",
        pallas_min_boxes=0))
    out64_j = jax.block_until_ready(jit_fn(b64, jnp.array([img_w, img_h],
                                                          jnp.float32)))
    assert jnp.allclose(out64_j, ref64, atol=1e-6, rtol=1e-6)

    # 3) Rows not divisible by the tile -> exercises the masked boundary block.
    b_rag = make_boxes(keys[3], 1056)                    # 33 rows of 128 lanes
    out_rag = jax.block_until_ready(
        get_boxes_tensor(b_rag, (img_w, img_h), pallas_min_boxes=0))
    ref_rag = _reference(b_rag, (img_w, img_h))
    assert jnp.allclose(out_rag, ref_rag, atol=1e-6, rtol=1e-6)

    # 4) Larger aligned case -> default Pallas path; grid splits into >= 2
    #    parallel steps (both TensorCores on v7x). Also check fmt='xyxy'.
    b_big = make_boxes(keys[4], 8192)
    out_big = jax.block_until_ready(
        get_boxes_tensor(b_big, (img_w, img_h), fmt="cxcywh",
                         normalize="with_padding"))
    ref_big = _reference(b_big, (img_w, img_h))
    assert jnp.allclose(out_big, ref_big, atol=1e-6, rtol=1e-6)

    out_xyxy = jax.block_until_ready(
        get_boxes_tensor(b_big, (img_w, img_h), fmt="xyxy",
                         normalize="with_padding", pallas_min_boxes=0))
    ref_xyxy = b_big / jnp.array([img_w, img_h, img_w, img_h], jnp.float32)
    assert jnp.allclose(out_xyxy, ref_xyxy, atol=1e-6, rtol=1e-6)

    print("KERNEL_OK")
</pallas_src>

<mosaic_0001>
module attributes {stable_mosaic.version = 11 : i64} {
  func.func @_boxes_kernel(%arg0: i32, %arg1: memref<2x128xf32, #tpu.memory_space<vmem>>, %arg2: memref<2xf32, #tpu.memory_space<smem>>, %arg3: memref<2x128xf32, #tpu.memory_space<vmem>>) attributes {dimension_semantics = [#tpu.dimension_semantics<parallel>], iteration_bounds = array<i64: 1>, scalar_prefetch = 0 : i64, scratch_operands = 0 : i64, tpu.core_type = #tpu.core_type<tc>, window_params = [{transform_indices = @transform_0, window_bounds = array<i64: 2, 128>}, {transform_indices = @transform_1, window_bounds = array<i64: 2>}, {transform_indices = @transform_2, window_bounds = array<i64: 2, 128>}]} {
    %c0 = arith.constant 0 : index
    %c0_0 = arith.constant 0 : index
    %0 = vector.load %arg1[%c0, %c0_0] : memref<2x128xf32, #tpu.memory_space<vmem>>, vector<2x128xf32>
    %c0_1 = arith.constant 0 : index
    %1 = memref.load %arg2[%c0_1] : memref<2xf32, #tpu.memory_space<smem>>
    %c1 = arith.constant 1 : index
    %2 = memref.load %arg2[%c1] : memref<2xf32, #tpu.memory_space<smem>>
    %3 = tpu.iota {dimensions = array<i32: 1>} : vector<2x128xi32>
    %c2_i32 = arith.constant 2 : i32
    %c0_i32 = arith.constant 0 : i32
    %4 = arith.cmpi eq, %c2_i32, %c0_i32 : i32
    %c1_i32 = arith.constant 1 : i32
    %5 = arith.select %4, %c1_i32, %c2_i32 : i32
    %6 = vector.broadcast %5 : i32 to vector<2x128xi32>
    %7 = arith.remsi %3, %6 : vector<2x128xi32>
    %c0_i32_2 = arith.constant 0 : i32
    %8 = vector.broadcast %c0_i32_2 : i32 to vector<2x128xi32>
    %9 = arith.cmpi ne, %7, %8 : vector<2x128xi32>
    %c0_i32_3 = arith.constant 0 : i32
    %10 = vector.broadcast %c0_i32_3 : i32 to vector<2x128xi32>
    %11 = arith.cmpi slt, %7, %10 : vector<2x128xi32>
    %c0_i32_4 = arith.constant 0 : i32
    %12 = arith.cmpi slt, %5, %c0_i32_4 : i32
    %13 = vector.broadcast %12 : i1 to vector<2x128xi1>
    %14 = vector.broadcast %13 : vector<2x128xi1> to vector<2x128xi1>
    %15 = arith.xori %11, %14 : vector<2x128xi1>
    %16 = arith.andi %15, %9 : vector<2x128xi1>
    %17 = vector.broadcast %5 : i32 to vector<2x128xi32>
    %18 = arith.addi %7, %17 : vector<2x128xi32>
    %19 = arith.select %16, %18, %7 : vector<2x128xi1>, vector<2x128xi32>
    %c0_i32_5 = arith.constant 0 : i32
    %20 = vector.broadcast %c0_i32_5 : i32 to vector<2x128xi32>
    %21 = arith.cmpi eq, %19, %20 : vector<2x128xi32>
    %22 = vector.broadcast %1 : f32 to vector<2x128xf32>
    %23 = vector.broadcast %2 : f32 to vector<2x128xf32>
    %24 = arith.select %21, %22, %23 : vector<2x128xi1>, vector<2x128xf32>
    %c126_i32 = arith.constant 126 : i32
    %25 = tpu.dynamic_rotate %0 by %c126_i32 dim 1 : vector<2x128xf32>, i32 -> vector<2x128xf32>
    %c2_i32_6 = arith.constant 2 : i32
    %26 = tpu.dynamic_rotate %0 by %c2_i32_6 dim 1 : vector<2x128xf32>, i32 -> vector<2x128xf32>
    %c4_i32 = arith.constant 4 : i32
    %c0_i32_7 = arith.constant 0 : i32
    %27 = arith.cmpi eq, %c4_i32, %c0_i32_7 : i32
    %c1_i32_8 = arith.constant 1 : i32
    %28 = arith.select %27, %c1_i32_8, %c4_i32 : i32
    %29 = vector.broadcast %28 : i32 to vector<2x128xi32>
    %30 = arith.remsi %3, %29 : vector<2x128xi32>
    %c0_i32_9 = arith.constant 0 : i32
    %31 = vector.broadcast %c0_i32_9 : i32 to vector<2x128xi32>
    %32 = arith.cmpi ne, %30, %31 : vector<2x128xi32>
    %c0_i32_10 = arith.constant 0 : i32
    %33 = vector.broadcast %c0_i32_10 : i32 to vector<2x128xi32>
    %34 = arith.cmpi slt, %30, %33 : vector<2x128xi32>
    %c0_i32_11 = arith.constant 0 : i32
    %35 = arith.cmpi slt, %28, %c0_i32_11 : i32
    %36 = vector.broadcast %35 : i1 to vector<2x128xi1>
    %37 = vector.broadcast %36 : vector<2x128xi1> to vector<2x128xi1>
    %38 = arith.xori %34, %37 : vector<2x128xi1>
    %39 = arith.andi %38, %32 : vector<2x128xi1>
    %40 = vector.broadcast %28 : i32 to vector<2x128xi32>
    %41 = arith.addi %30, %40 : vector<2x128xi32>
    %42 = arith.select %39, %41, %30 : vector<2x128xi1>, vector<2x128xi32>
    %c2_i32_12 = arith.constant 2 : i32
    %43 = vector.broadcast %c2_i32_12 : i32 to vector<2x128xi32>
    %44 = arith.cmpi slt, %42, %43 : vector<2x128xi32>
    %45 = arith.addf %0, %25 : vector<2x128xf32>
    %cst = arith.constant 5.000000e-01 : f32
    %46 = vector.broadcast %cst : f32 to vector<2x128xf32>
    %47 = arith.mulf %45, %46 : vector<2x128xf32>
    %48 = arith.subf %0, %26 : vector<2x128xf32>
    %49 = arith.select %44, %47, %48 : vector<2x128xi1>, vector<2x128xf32>
    %50 = arith.mulf %49, %24 : vector<2x128xf32>
    %c0_13 = arith.constant 0 : index
    %c0_14 = arith.constant 0 : index
    %51 = vector.load %arg3[%c0_13, %c0_14] : memref<2x128xf32, #tpu.memory_space<vmem>>, vector<2x128xf32>
    tpu.vector_store %arg3[%c0_13, %c0_14], %50 {strides = array<i32>} : memref<2x128xf32, #tpu.memory_space<vmem>>, vector<2x128xf32>,
    return
  }
  func.func @transform_0(%arg0: i32) -> (i32, i32) {
    %c0_i32 = arith.constant 0 : i32
    %c0_i32_0 = arith.constant 0 : i32
    return %arg0, %c0_i32 : i32, i32
  }
  func.func @transform_1(%arg0: i32) -> i32 {
    %c0_i32 = arith.constant 0 : i32
    %c0_i32_0 = arith.constant 0 : i32
    return %c0_i32 : i32
  }
  func.func @transform_2(%arg0: i32) -> (i32, i32) {
    %c0_i32 = arith.constant 0 : i32
    %c0_i32_0 = arith.constant 0 : i32
    return %arg0, %c0_i32 : i32, i32
  }
}

</mosaic_0001>

<llo_original>
// kernel: tpu_custom_call.1
$region0: #{tpu_custom_call.1}
  #allocation0 [shape = 'u32[]', space=smem, size = 0x4, offset = 0x4, fixed_abs, tag = 'smem constant byte address 0x4 - core index']
  #allocation1 [shape = 'u32[144,128]{1,0:T(1,128)}', space=vmem, size = 0x12000, scoped, tag = 'internal scratch']
  %s0 = inlined_call_operand.hbm [shape: f32[2,128], index: 0, kind: input, shape index: {}]
  %s1 = inlined_call_operand.vmem [shape: f32[2], index: 1, kind: input, shape index: {}]
  %s2 = inlined_call_operand.hbm [shape: f32[2,128], index: 2, kind: output, shape index: {}]
  %s3 = sld [smem:[#allocation0]]
  $region26: #{tpu_custom_call.1} parent=0
    _
  %s5 = ssub.s32 1, %s3
  %s6 = scalar_select 0, %s5, %s3
  $region1: #{tpu_custom_call.1} parent=0
    #allocation2 [shape = 'u8[1024]{0}', space=vmem, size = 0x400, scoped, tag = 'input window, operand 0, single buffered']
    #allocation3 [shape = 's32[1]{0}', space=sflag, size = 0x4, scoped, tag = 'scoped memory for tpu_custom_call.1']
    #allocation4 [shape = 's32[1]{0}', space=sflag, size = 0x4, scoped, tag = 'scoped memory for tpu_custom_call.1']
    #allocation5 [shape = 's32[1]{0}', space=sflag, size = 0x4, scoped, tag = 'scoped memory for tpu_custom_call.1']
    #allocation6 [shape = 'u8[512]{0}', space=smem, size = 0x200, scoped, tag = 'input window, operand 1, single buffered']
    #allocation7 [shape = 'u8[1024]{0}', space=vmem, size = 0x400, scoped, tag = 'output window, operand 0, single buffered']
    %7 = vsyncpa [#allocation3], 0
    %8 = vsyncpa [#allocation5], 0
    %9 = vsyncpa [#allocation4], 0
    // Predicated region
    $region2: #{tpu_custom_call.1} parent=1 // pred_check
      _
    $region3: #{tpu_custom_call.1} parent=1 // pred_check_branch
      %11 = sbr.rel (0) target = $region5
    $region4: #{tpu_custom_call.1} parent=1 // pred_region
      %s13 = ssub.s32 32, 32
      %14 = vsyncadd [#allocation3], %s13
      %s16 = sshll.u32 [#allocation2], 4
      %s17 = int_to_ptr.vmem [resolvable:$true] %s16
      %19 = dma.hbm_to_vmem [thread:$0]  %s0, 32, %s17, [#allocation3]
    $region5: #{tpu_custom_call.1} parent=1 // pred_fallthru
      _
    // Predicated region
    $region6: #{tpu_custom_call.1} parent=1 // pred_check
      _
    $region7: #{tpu_custom_call.1} parent=1 // pred_check_branch
      %21 = sbr.rel (0) target = $region9
    $region8: #{tpu_custom_call.1} parent=1 // pred_region
      %s23 = ssub.s32 16, 16
      %24 = vsyncadd [#allocation5], %s23
      %s26 = sshll.u32 %s1, 4
      %s27 = int_to_ptr.vmem [resolvable:$true] %s26
      %29 = dma.vmem_to_smem %s27, 16, [#allocation6], [#allocation5]
    $region9: #{tpu_custom_call.1} parent=1 // pred_fallthru
      _
    // Predicated region
    $region10: #{tpu_custom_call.1} parent=1 // pred_check
      _
    $region11: #{tpu_custom_call.1} parent=1 // pred_check_branch
      %31 = sbr.rel (0) target = $region13
    $region12: #{tpu_custom_call.1} parent=1 // pred_region
      %32 = dma.done [#allocation3], 32
    $region13: #{tpu_custom_call.1} parent=1 // pred_fallthru
      _
    // Predicated region
    $region14: #{tpu_custom_call.1} parent=1 // pred_check
      _
    $region15: #{tpu_custom_call.1} parent=1 // pred_check_branch
      %34 = sbr.rel (0) target = $region17
    $region16: #{tpu_custom_call.1} parent=1 // pred_region
      %35 = dma.done [#allocation5], 16
    $region17: #{tpu_custom_call.1} parent=1 // pred_fallthru
      _
    %36 = sfence
    %v37 = vld [vmem:[#allocation2] sm:$0x3]
    %s38 = sld [smem:[#allocation6]]
    %s39 = sld [smem:[#allocation6 + $0x1]]
    %v40 = vlaneseq
    %v41 = vand.u32 %v40, 127
    %vm42 = vcmp.lt.s32.totalorder %v41, 0
    %v43 = vsub.s32 0, %v41
    %v44 = vsel %vm42, %v43, %v41
    %v45 = vshrl.u32 %v44, 1
    %v46 = vand.u32 %v44, 1
    %v47 = vsub.s32 0, %v46
    %v48 = vsel %vm42, %v47, %v46
    %vm49 = vcmp.ne.s32.totalorder %v48, 0
    %vm50 = vcmp.lt.s32.totalorder %v48, 0
    %vm51 = vmand %vm50, %vm49
    %v52 = vadd.s32 %v48, 2
    %v53 = vsel %vm51, %v52, %v48
    %vm54 = vcmp.eq.s32.totalorder %v53, 0
    %v55 = vstv %s38
    %v56 = vstv %s39
    %v57 = vsel %vm54, %v55, %v56
    %58 = vrot.lane.b32.xlu0 %v37, 126
    %v59 = vpop.permute.xlu0 %58
    %60 = vrot.lane.b32.xlu0 %v37, 2
    %v61 = vpop.permute.xlu0 %60
    %vm62 = vcmp.lt.s32.totalorder %v41, 0
    %v63 = vsub.s32 0, %v41
    %v64 = vsel %vm62, %v63, %v41
    %v65 = vshrl.u32 %v64, 2
    %v66 = vand.u32 %v64, 3
    %v67 = vsub.s32 0, %v66
    %v68 = vsel %vm62, %v67, %v66
    %vm69 = vcmp.ne.s32.totalorder %v68, 0
    %vm70 = vcmp.lt.s32.totalorder %v68, 0
    %vm71 = vmand %vm70, %vm69
    %v72 = vadd.s32 %v68, 4
    %v73 = vsel %vm71, %v72, %v68
    %vm74 = vcmp.lt.s32.totalorder %v73, 2
    %v75 = vadd.f32 %v37, %v59
    %v76 = vmul.f32 %v75, 0.5
    %v77 = vsub.f32 %v37, %v61
    %v78 = vsel %vm74, %v76, %v77
    %v79 = vmul.f32 %v78, %v57
    %80 = vst [vmem:[#allocation7] sm:$0x3] %v79
    // Predicated region
    $region18: #{tpu_custom_call.1} parent=1 // pred_check
      _
    $region19: #{tpu_custom_call.1} parent=1 // pred_check_branch
      %82 = sbr.rel (0) target = $region21
    $region20: #{tpu_custom_call.1} parent=1 // pred_region
      %s84 = ssub.s32 32, 32
      %85 = vsyncadd [#allocation4], %s84
      %s87 = sshll.u32 [#allocation7], 4
      %s88 = int_to_ptr.vmem [resolvable:$true] %s87
      %90 = dma.vmem_to_hbm [thread:$0]  %s88, 32, %s2, [#allocation4]
    $region21: #{tpu_custom_call.1} parent=1 // pred_fallthru
      _
    // Predicated region
    $region22: #{tpu_custom_call.1} parent=1 // pred_check
      _
    $region23: #{tpu_custom_call.1} parent=1 // pred_check_branch
      %92 = sbr.rel (0) target = $region25
    $region24: #{tpu_custom_call.1} parent=1 // pred_region
      %93 = dma.done [#allocation4], 32
    $region25: #{tpu_custom_call.1} parent=1 // pred_fallthru
      _
    %94 = vsyncpa [#allocation3], 1
    %95 = vsyncpa [#allocation4], 1
    %96 = vsyncpa [#allocation5], 1

</llo_original>
